<compile_context>
chip_gen: v5e
topology: v5e:2x2
jax: 0.10.0
libtpu: 0.0.40
codegen_flags: <defaults>
</compile_context>

<pallas_src>
import functools

import jax
import jax.numpy as jnp
from jax.experimental import pallas as pl
from jax.experimental.pallas import tpu as pltpu

LN_EPS = 1e-5  # PyTorch nn.LayerNorm default


def _sgu_kernel(d_true, u_ref, v_ref, gamma_ref, beta_ref, w_ref, b_ref, o_ref):
    """One grid step: LayerNorm(v) -> spatial projection -> gate with u.

    u_ref/v_ref: (Bblk, S, Dp) windows; gamma/beta: (1, Dp); w: (S, S) in the
    MXU dtype; b: (S, 1) f32; o_ref: (Bblk, S, Dp). d_true <= Dp is the
    un-padded feature dim.
    """
    bblk, seq, dp = v_ref.shape
    gamma = gamma_ref[...]
    beta = beta_ref[...]
    w = w_ref[...]
    # Hoisted once per grid step (JAX does not CSE broadcast_in_dim).
    bias = jnp.broadcast_to(b_ref[...], (seq, dp))

    def _layernorm(v32):  # (S, Dp) f32 -> (S, Dp) in the MXU dtype
        if d_true < dp:
            # Padded lanes hold zeros: keep true-D denominators and mask the
            # padded lanes out of the variance.
            inv_d = 1.0 / d_true
            mean = jnp.sum(v32, axis=-1, keepdims=True) * inv_d
            cen = v32 - mean
            lane = jax.lax.broadcasted_iota(jnp.int32, v32.shape, 1)
            cen = jnp.where(lane < d_true, cen, 0.0)
            var = jnp.sum(cen * cen, axis=-1, keepdims=True) * inv_d
        else:
            # Two-pass stats (matches PyTorch; no E[x^2]-mean^2 cancellation).
            mean = jnp.mean(v32, axis=-1, keepdims=True)
            cen = v32 - mean
            var = jnp.mean(cen * cen, axis=-1, keepdims=True)
        vn = cen * jax.lax.rsqrt(var + LN_EPS) * gamma + beta
        return vn.astype(w.dtype)

    def _one_batch(bb):
        vn = _layernorm(v_ref[bb].astype(jnp.float32))
        # Conv1d(k=1) over channels==seq  ==  (S, S) @ (S, Dp) + bias.
        vs = jnp.dot(w, vn, preferred_element_type=jnp.float32) + bias
        # u is only touched here -> short live range, gate + store in one go.
        o_ref[bb] = (u_ref[bb].astype(jnp.float32) * vs).astype(o_ref.dtype)

    if bblk == 1:
        _one_batch(0)
    else:
        # fori_loop (not a static Python unroll): bounds live ranges to one
        # (S, Dp) slab and emits a single loop body into the VLIW stream.
        def body(bb, carry):
            _one_batch(bb)
            return carry

        jax.lax.fori_loop(0, bblk, body, 0)


def _const_spec(shape):
    """BlockSpec for a grid-invariant parameter (single-buffered if supported)."""
    ndim = len(shape)
    index_map = lambda i: (0,) * ndim
    try:
        return pl.BlockSpec(shape, index_map, pipeline_mode=pl.Buffered(1))
    except (TypeError, AttributeError):  # older jax without pipeline_mode
        return pl.BlockSpec(shape, index_map)


def _vmem_capacity_bytes():
    try:
        return int(pltpu.get_tpu_info().vmem_capacity_bytes)
    except Exception:
        return 64 << 20  # conservative (v7x-sized) fallback


def _pick_batch_block(batch, seq, dp, in_itemsize, out_itemsize, budget_bytes,
                      const_bytes):
    """Largest batch block whose per-step VMEM footprint fits `budget_bytes`.

    Per batch element and per grid step:
      * u + v input windows, double-buffered by the auto-pipeline: 2*2*in_itemsize
      * output window, double-buffered:                            2*out_itemsize
      * in-kernel f32 temporaries (v32/centered, vn, vs, gated):   ~4 f32 slabs
    """
    per_batch = seq * dp * (4 * in_itemsize + 2 * out_itemsize + 4 * 4)
    avail = max(budget_bytes - const_bytes, per_batch)
    bblk = max(1, min(batch, avail // per_batch))
    # Keep >= 2 grid steps: megacore sharding (v7x) + prefetch/writeback overlap.
    bblk = min(bblk, max(1, batch // 2))
    while batch % bblk:
        bblk -= 1
    return int(bblk)


def spatial_gating_unit(x, gamma, beta, w, b, *, mxu_bf16=False):
    """x: (B, S, 2*D); gamma/beta: (D,); w: (S, S); b: (S,). Returns (B, S, D)."""
    B, S, two_d = x.shape
    assert two_d % 2 == 0, "last dim must be 2 * d_ffn"
    D = two_d // 2
    aligned = (D % 128 == 0)
    Dp = D if aligned else int(pl.cdiv(D, 128)) * 128

    # MXU operand dtype: f32 by default (memory-bound kernel, parity with the
    # PyTorch module); bf16 opt-in or automatic for bf16 activations.
    mxu_dtype = jnp.bfloat16 if (mxu_bf16 or x.dtype == jnp.bfloat16) else jnp.float32

    gamma2 = gamma.reshape(1, D).astype(jnp.float32)
    beta2 = beta.reshape(1, D).astype(jnp.float32)
    w2 = w.astype(mxu_dtype)
    b2 = b.reshape(S, 1).astype(jnp.float32)

    # Generation-aware VMEM sizing (v5e/v6e: 128 MiB, v7x: 64 MiB per core).
    cap = _vmem_capacity_bytes()
    budget = max(min(cap // 4, 32 << 20), 8 << 20)       # per-step working set target
    vmem_limit = max(min(cap // 2, 64 << 20), 16 << 20)  # scoped limit for the compiler

    itemsize = x.dtype.itemsize
    const_bytes = 2 * (S * S * jnp.dtype(mxu_dtype).itemsize + 2 * Dp * 4 + S * 4)
    bblk = _pick_batch_block(B, S, Dp, itemsize, itemsize, budget, const_bytes)
    grid = (B // bblk,)

    if aligned:
        # Zero-copy u/v split: two lane-aligned rectangular windows onto x.
        u_in, v_in = x, x
        u_spec = pl.BlockSpec((bblk, S, D), lambda i: (i, 0, 0))
        v_spec = pl.BlockSpec((bblk, S, D), lambda i: (i, 0, 1))
    else:
        # Lane-unaligned d_ffn: pad to a multiple of 128 in the wrapper so every
        # in-kernel load/store is lane-dense; slice back outside the kernel.
        pad = Dp - D
        u_in = jnp.pad(x[..., :D], ((0, 0), (0, 0), (0, pad)))
        v_in = jnp.pad(x[..., D:], ((0, 0), (0, 0), (0, pad)))
        gamma2 = jnp.pad(gamma2, ((0, 0), (0, pad)))
        beta2 = jnp.pad(beta2, ((0, 0), (0, pad)))
        u_spec = pl.BlockSpec((bblk, S, Dp), lambda i: (i, 0, 0))
        v_spec = pl.BlockSpec((bblk, S, Dp), lambda i: (i, 0, 0))

    in_specs = [u_spec, v_spec,
                _const_spec((1, Dp)), _const_spec((1, Dp)),
                _const_spec((S, S)), _const_spec((S, 1))]
    out_spec = pl.BlockSpec((bblk, S, Dp), lambda i: (i, 0, 0))

    cost = pl.CostEstimate(
        flops=int(2 * B * S * S * Dp + 12 * B * S * Dp),
        transcendentals=int(B * S),
        bytes_accessed=int(B * S * 2 * D * itemsize            # x (u + v halves)
                           + B * S * Dp * itemsize             # out
                           + S * S * jnp.dtype(mxu_dtype).itemsize
                           + (2 * Dp + S) * 4),
    )
    cparams = pltpu.CompilerParams(
        dimension_semantics=("parallel",),
        vmem_limit_bytes=int(vmem_limit),
    )

    # TODO(synk): for seq_len >= ~1K add an S-row tiling path (block the W output
    # rows over a second "parallel" grid axis) so the (S,S) weight plus the
    # (bblk,S,D) blocks stay inside v7x's 64 MiB VMEM.

    out = pl.pallas_call(
        functools.partial(_sgu_kernel, D),
        out_shape=jax.ShapeDtypeStruct((B, S, Dp), x.dtype),
        grid_spec=pltpu.PrefetchScalarGridSpec(
            num_scalar_prefetch=0, grid=grid,
            in_specs=in_specs, out_specs=out_spec),
        compiler_params=cparams,
        cost_estimate=cost,
    )(u_in, v_in, gamma2, beta2, w2, b2)

    return out if aligned else out[..., :D]


def reference(x, gamma, beta, w, b):
    """Pure-JAX f32 reference of the PyTorch module's forward."""
    D = x.shape[-1] // 2
    u, v = x[..., :D].astype(jnp.float32), x[..., D:].astype(jnp.float32)
    mean = jnp.mean(v, axis=-1, keepdims=True)
    var = jnp.mean((v - mean) ** 2, axis=-1, keepdims=True)
    vn = (v - mean) * jax.lax.rsqrt(var + LN_EPS) * gamma + beta
    vs = jnp.einsum("ij,bjd->bid", w.astype(jnp.float32), vn,
                    precision=jax.lax.Precision.HIGHEST) + b[None, :, None]
    return (u * vs).astype(x.dtype)


if __name__ == "__main__":
    key = jax.random.PRNGKey(0)
    kx, kw, kg, kb, kx2, kx3 = jax.random.split(key, 6)

    # 1) Lane-aligned d_ffn (zero-copy BlockSpec u/v split), bblk==1, f32 MXU.
    #    batch=2, seq_len=8, d_ffn=128  (x: (B, S, 2*d_ffn))
    B, S, D = 2, 8, 128
    x = jax.random.normal(kx, (B, S, 2 * D), dtype=jnp.float32)
    gamma = 1.0 + 0.1 * jax.random.normal(kg, (D,), dtype=jnp.float32)
    beta = 0.05 * jax.random.normal(kb, (D,), dtype=jnp.float32)
    w = jax.random.normal(kw, (S, S), dtype=jnp.float32) * 0.1   # Conv1d(S,S,1) weight
    bias = jnp.full((S,), 1.0, dtype=jnp.float32)                # bias init = 1.0

    out = jax.block_until_ready(spatial_gating_unit(x, gamma, beta, w, bias))
    ref = reference(x, gamma, beta, w, bias)
    assert out.shape == (B, S, D)
    assert jnp.allclose(out, ref, atol=2e-2, rtol=2e-2), "mismatch (aligned, f32)"

    # 2) Larger batch -> multi-batch fori_loop path (bblk > 1) and a >=2-step grid.
    B3 = 8
    x3 = jax.random.normal(kx3, (B3, S, 2 * D), dtype=jnp.float32)
    out3 = jax.block_until_ready(spatial_gating_unit(x3, gamma, beta, w, bias))
    ref3 = reference(x3, gamma, beta, w, bias)
    assert jnp.allclose(out3, ref3, atol=2e-2, rtol=2e-2), "mismatch (bblk > 1)"

    # 3) Lane-unaligned d_ffn=32 -> padded-lane path (default LayerNorm init).
    D2 = 32
    x2 = jax.random.normal(kx2, (B, S, 2 * D2), dtype=jnp.float32)
    gamma_s = jnp.ones((D2,), dtype=jnp.float32)
    beta_s = jnp.zeros((D2,), dtype=jnp.float32)
    w_s = jax.random.normal(kw, (S, S), dtype=jnp.float32) * 0.1
    bias_s = jnp.full((S,), 1.0, dtype=jnp.float32)
    out2 = jax.block_until_ready(spatial_gating_unit(x2, gamma_s, beta_s, w_s, bias_s))
    ref2 = reference(x2, gamma_s, beta_s, w_s, bias_s)
    assert out2.shape == (B, S, D2)
    assert jnp.allclose(out2, ref2, atol=2e-2, rtol=2e-2), "mismatch (padded)"

    # 4) bf16 activations end-to-end (bf16 loads/stores, f32 LN stats, bf16 MXU).
    xb = x.astype(jnp.bfloat16)
    outb = jax.block_until_ready(spatial_gating_unit(xb, gamma, beta, w, bias))
    refb = reference(xb.astype(jnp.float32), gamma, beta, w, bias)
    assert outb.dtype == jnp.bfloat16
    assert jnp.allclose(outb.astype(jnp.float32), refb, atol=1e-1, rtol=1e-1), \
        "mismatch (bf16 activations)"

    print("KERNEL_OK")
</pallas_src>

<mosaic_0001>
module attributes {stable_mosaic.version = 11 : i64} {
  func.func @_sgu_kernel(%arg0: i32, %arg1: memref<1x8x128xf32, #tpu.memory_space<vmem>>, %arg2: memref<1x8x128xf32, #tpu.memory_space<vmem>>, %arg3: memref<1x128xf32, #tpu.memory_space<vmem>>, %arg4: memref<1x128xf32, #tpu.memory_space<vmem>>, %arg5: memref<8x8xf32, #tpu.memory_space<vmem>>, %arg6: memref<8x1xf32, #tpu.memory_space<vmem>>, %arg7: memref<1x8x128xf32, #tpu.memory_space<vmem>>) attributes {dimension_semantics = [#tpu.dimension_semantics<parallel>], iteration_bounds = array<i64: 2>, scalar_prefetch = 0 : i64, scratch_operands = 0 : i64, tpu.core_type = #tpu.core_type<tc>, window_params = [{transform_indices = @transform_0, window_bounds = array<i64: 1, 8, 128>}, {transform_indices = @transform_1, window_bounds = array<i64: 1, 8, 128>}, {pipeline_mode = #tpu.pipeline_mode<synchronous>, transform_indices = @transform_2, window_bounds = array<i64: 1, 128>}, {pipeline_mode = #tpu.pipeline_mode<synchronous>, transform_indices = @transform_3, window_bounds = array<i64: 1, 128>}, {pipeline_mode = #tpu.pipeline_mode<synchronous>, transform_indices = @transform_4, window_bounds = array<i64: 8, 8>}, {pipeline_mode = #tpu.pipeline_mode<synchronous>, transform_indices = @transform_5, window_bounds = array<i64: 8, 1>}, {transform_indices = @transform_6, window_bounds = array<i64: 1, 8, 128>}]} {
    %c0 = arith.constant 0 : index
    %c0_0 = arith.constant 0 : index
    %0 = vector.load %arg3[%c0, %c0_0] : memref<1x128xf32, #tpu.memory_space<vmem>>, vector<1x128xf32>
    %c0_1 = arith.constant 0 : index
    %c0_2 = arith.constant 0 : index
    %1 = vector.load %arg4[%c0_1, %c0_2] : memref<1x128xf32, #tpu.memory_space<vmem>>, vector<1x128xf32>
    %c0_3 = arith.constant 0 : index
    %c0_4 = arith.constant 0 : index
    %2 = vector.load %arg5[%c0_3, %c0_4] : memref<8x8xf32, #tpu.memory_space<vmem>>, vector<8x8xf32>
    %c0_5 = arith.constant 0 : index
    %c0_6 = arith.constant 0 : index
    %3 = vector.load %arg6[%c0_5, %c0_6] : memref<8x1xf32, #tpu.memory_space<vmem>>, vector<8x1xf32>
    %4 = vector.shape_cast %3 : vector<8x1xf32> to vector<8x1xf32>
    %5 = vector.broadcast %4 : vector<8x1xf32> to vector<8x128xf32>
    %c0_7 = arith.constant 0 : index
    %c0_8 = arith.constant 0 : index
    %c0_9 = arith.constant 0 : index
    %6 = vector.load %arg2[%c0_7, %c0_8, %c0_9] : memref<1x8x128xf32, #tpu.memory_space<vmem>>, vector<1x8x128xf32>
    %7 = vector.shape_cast %6 : vector<1x8x128xf32> to vector<8x128xf32>
    %cst = arith.constant dense<0.000000e+00> : vector<8xf32>
    %8 = vector.multi_reduction <add>, %7, %cst [1] : vector<8x128xf32> to vector<8xf32>
    %9 = vector.shape_cast %8 : vector<8xf32> to vector<8x1xf32>
    %cst_10 = arith.constant 1.280000e+02 : f32
    %10 = vector.broadcast %cst_10 : f32 to vector<8x1xf32>
    %11 = arith.divf %9, %10 : vector<8x1xf32>
    %12 = vector.broadcast %11 : vector<8x1xf32> to vector<8x128xf32>
    %13 = arith.subf %7, %12 : vector<8x128xf32>
    %14 = arith.mulf %13, %13 : vector<8x128xf32>
    %cst_11 = arith.constant dense<0.000000e+00> : vector<8xf32>
    %15 = vector.multi_reduction <add>, %14, %cst_11 [1] : vector<8x128xf32> to vector<8xf32>
    %16 = vector.shape_cast %15 : vector<8xf32> to vector<8x1xf32>
    %cst_12 = arith.constant 1.280000e+02 : f32
    %17 = vector.broadcast %cst_12 : f32 to vector<8x1xf32>
    %18 = arith.divf %16, %17 : vector<8x1xf32>
    %cst_13 = arith.constant 9.99999974E-6 : f32
    %19 = vector.broadcast %cst_13 : f32 to vector<8x1xf32>
    %20 = arith.addf %18, %19 : vector<8x1xf32>
    %21 = math.rsqrt %20 : vector<8x1xf32>
    %22 = vector.broadcast %21 : vector<8x1xf32> to vector<8x128xf32>
    %23 = arith.mulf %13, %22 : vector<8x128xf32>
    %24 = vector.broadcast %0 : vector<1x128xf32> to vector<8x128xf32>
    %25 = arith.mulf %23, %24 : vector<8x128xf32>
    %26 = vector.broadcast %1 : vector<1x128xf32> to vector<8x128xf32>
    %27 = arith.addf %25, %26 : vector<8x128xf32>
    %cst_14 = arith.constant dense<0.000000e+00> : vector<8x128xf32>
    %28 = tpu.matmul %2, %27, %cst_14 {dimension_numbers = #tpu.dot_dimension_numbers<[1], [0], [0], [1], [0, 0, 1, 1], [], []>} : vector<8x8xf32>, vector<8x128xf32>, vector<8x128xf32> -> vector<8x128xf32>
    %29 = arith.addf %28, %5 : vector<8x128xf32>
    %c0_15 = arith.constant 0 : index
    %c0_16 = arith.constant 0 : index
    %c0_17 = arith.constant 0 : index
    %30 = vector.load %arg1[%c0_15, %c0_16, %c0_17] : memref<1x8x128xf32, #tpu.memory_space<vmem>>, vector<1x8x128xf32>
    %31 = vector.shape_cast %30 : vector<1x8x128xf32> to vector<8x128xf32>
    %32 = arith.mulf %31, %29 : vector<8x128xf32>
    %c0_18 = arith.constant 0 : index
    %c0_19 = arith.constant 0 : index
    %c0_20 = arith.constant 0 : index
    %33 = vector.load %arg7[%c0_18, %c0_19, %c0_20] : memref<1x8x128xf32, #tpu.memory_space<vmem>>, vector<1x8x128xf32>
    %34 = vector.shape_cast %33 : vector<1x8x128xf32> to vector<8x128xf32>
    %35 = vector.shape_cast %32 : vector<8x128xf32> to vector<1x8x128xf32>
    tpu.vector_store %arg7[%c0_18, %c0_19, %c0_20], %35 {strides = array<i32>} : memref<1x8x128xf32, #tpu.memory_space<vmem>>, vector<1x8x128xf32>,
    return
  }
  func.func @transform_0(%arg0: i32) -> (i32, i32, i32) {
    %c0_i32 = arith.constant 0 : i32
    %c0_i32_0 = arith.constant 0 : i32
    %c0_i32_1 = arith.constant 0 : i32
    return %arg0, %c0_i32, %c0_i32_0 : i32, i32, i32
  }
  func.func @transform_1(%arg0: i32) -> (i32, i32, i32) {
    %c0_i32 = arith.constant 0 : i32
    %c1_i32 = arith.constant 1 : i32
    %c0_i32_0 = arith.constant 0 : i32
    return %arg0, %c0_i32, %c1_i32 : i32, i32, i32
  }
  func.func @transform_2(%arg0: i32) -> (i32, i32) {
    %c0_i32 = arith.constant 0 : i32
    %c0_i32_0 = arith.constant 0 : i32
    %c0_i32_1 = arith.constant 0 : i32
    return %c0_i32, %c0_i32_0 : i32, i32
  }
  func.func @transform_3(%arg0: i32) -> (i32, i32) {
    %c0_i32 = arith.constant 0 : i32
    %c0_i32_0 = arith.constant 0 : i32
    %c0_i32_1 = arith.constant 0 : i32
    return %c0_i32, %c0_i32_0 : i32, i32
  }
  func.func @transform_4(%arg0: i32) -> (i32, i32) {
    %c0_i32 = arith.constant 0 : i32
    %c0_i32_0 = arith.constant 0 : i32
    %c0_i32_1 = arith.constant 0 : i32
    return %c0_i32, %c0_i32_0 : i32, i32
  }
  func.func @transform_5(%arg0: i32) -> (i32, i32) {
    %c0_i32 = arith.constant 0 : i32
    %c0_i32_0 = arith.constant 0 : i32
    %c0_i32_1 = arith.constant 0 : i32
    return %c0_i32, %c0_i32_0 : i32, i32
  }
  func.func @transform_6(%arg0: i32) -> (i32, i32, i32) {
    %c0_i32 = arith.constant 0 : i32
    %c0_i32_0 = arith.constant 0 : i32
    %c0_i32_1 = arith.constant 0 : i32
    return %arg0, %c0_i32, %c0_i32_0 : i32, i32, i32
  }
}

</mosaic_0001>

<llo_original>
// kernel: tpu_custom_call.1
$region0: #{tpu_custom_call.1}
  #allocation0 [shape = 'u32[]', space=smem, size = 0x4, offset = 0x4, fixed_abs, tag = 'smem constant byte address 0x4 - core index']
  #allocation1 [shape = 'u32[72,128]{1,0:T(1,128)}', space=vmem, size = 0x9000, scoped, tag = 'internal scratch']
  %s0 = inlined_call_operand.hbm [shape: f32[2,8,256], index: 0, kind: input, shape index: {}]
  %s1 = inlined_call_operand.hbm [shape: f32[2,8,256], index: 1, kind: input, shape index: {}]
  %s2 = inlined_call_operand.vmem [shape: f32[1,128], index: 2, kind: input, shape index: {}]
  %s3 = inlined_call_operand.vmem [shape: f32[1,128], index: 3, kind: input, shape index: {}]
  %s4 = inlined_call_operand.vmem [shape: f32[8,8], index: 4, kind: input, shape index: {}]
  %s5 = inlined_call_operand.vmem [shape: f32[8,1], index: 5, kind: input, shape index: {}]
  %s6 = inlined_call_operand.hbm [shape: f32[2,8,128], index: 6, kind: output, shape index: {}]
  %s7 = sld [smem:[#allocation0]]
  $region65: #{tpu_custom_call.1} parent=0
    _
  %s9 = ssub.s32 1, %s7
  %s10 = scalar_select 0, %s9, %s7
  $region1: #{tpu_custom_call.1} parent=0
    #allocation2 [shape = 'u8[8192]{0}', space=vmem, size = 0x2000, scoped, tag = 'input window, operand 0']
    #allocation3 [shape = 's32[2]{0}', space=sflag, size = 0x8, scoped, tag = 'scoped memory for tpu_custom_call.1']
    #allocation4 [shape = 's32[2]{0}', space=sflag, size = 0x8, scoped, tag = 'scoped memory for tpu_custom_call.1']
    #allocation5 [shape = 'u8[8192]{0}', space=vmem, size = 0x2000, scoped, tag = 'input window, operand 1']
    #allocation6 [shape = 's32[2]{0}', space=sflag, size = 0x8, scoped, tag = 'scoped memory for tpu_custom_call.1']
    #allocation7 [shape = 'u8[8192]{0}', space=vmem, size = 0x2000, scoped, tag = 'output window, operand 0']
    %11 = vsyncpa [#allocation3], 0
    %s12 = scalar_lea.sflag [#allocation3], 1
    %13 = vsyncpa %s12, 0
    %14 = vsyncpa [#allocation6], 0
    %s15 = scalar_lea.sflag [#allocation6], 1
    %16 = vsyncpa %s15, 0
    %17 = vsyncpa [#allocation4], 0
    %s18 = scalar_lea.sflag [#allocation4], 1
    %19 = vsyncpa %s18, 0
    loop: start=0, step=1, limit=4
    $region2: #{tpu_custom_call.1} parent=1 // loop_pre_header
      _
    $region3: #{tpu_custom_call.1} parent=1 // loop_header
      %s21 = sphi 0, %s25
      %p22 = scmp.ge.s32.totalorder %s21, 4
      %s31 = sphi 0, %s33
      %s34 = sphi 0, %s31
      %s35 = sphi 0, %s34
      %s51 = sphi 0, %s35
      %s57 = sphi 0, %s59
      %s60 = sphi 0, %s57
      %s61 = sphi 0, %s60
      %s77 = sphi 0, %s61
      %s81 = sphi 0, %s81
      %s83 = sphi 0, %s81
      %s84 = sphi 0, %s83
      %s98 = sphi 0, %s84
      %s102 = sphi 0, %s102
      %s104 = sphi 0, %s102
      %s105 = sphi 0, %s104
      %s119 = sphi 0, %s105
      %s123 = sphi 0, %s123
      %s125 = sphi 0, %s123
      %s126 = sphi 0, %s125
      %s140 = sphi 0, %s126
      %s144 = sphi 0, %s144
      %s146 = sphi 0, %s144
      %s147 = sphi 0, %s146
      %s161 = sphi 0, %s147
      %s167 = sphi 0, %s169
      %s170 = sphi 0, %s167
      %s171 = sphi 0, %s170
      %s187 = sphi 0, %s171
    $region4: #{tpu_custom_call.1} parent=1 // loop_header_branch
      %24 = sbr.rel (%p22) target = $region8
    $region5: #{tpu_custom_call.1} parent=1 // loop_body
      %s26 = ssub.s32 %s21, 1
      %s27 = ssub.s32 %s21, 2
      %s28 = sadd.s32 %s21, 1
      %s29 = ssub.s32 %s21, %s28
      %p30 = scmp.eq.s32.totalorder %s29, 0
      %s32 = sadd.s32 %s31, 1
      %s33 = scalar_select %p30, %s31, %s32
      %p36 = pneg %p30
      %p37 = scmp.eq.s32.totalorder %s21, 1
      %p38 = por %p36, %p37
      %p39 = scmp.ne.s32.totalorder %s31, %s34
      %p40 = scmp.eq.s32.totalorder %s21, 0
      %p41 = por %p39, %p40
      %p42 = scmp.ne.s32.totalorder %s31, %s34
      %p43 = scmp.eq.s32.totalorder %s26, 1
      %p44 = por %p42, %p43
      %p45 = scmp.ne.s32.totalorder %s34, %s35
      %p46 = scmp.eq.s32.totalorder %s26, 0
      %p47 = por %p45, %p46
      %p48 = scmp.ne.s32.totalorder %s34, %s35
      %p49 = scmp.eq.s32.totalorder %s27, 1
      %p50 = por %p48, %p49
      %p52 = scmp.ne.s32.totalorder %s35, %s51
      %p53 = scmp.eq.s32.totalorder %s27, 0
      %p54 = por %p52, %p53
      %s55 = ssub.s32 %s21, %s28
      %p56 = scmp.eq.s32.totalorder %s55, 0
      %s58 = sadd.s32 %s57, 1
      %s59 = scalar_select %p56, %s57, %s58
      %p62 = pneg %p56
      %p63 = scmp.eq.s32.totalorder %s21, 1
      %p64 = por %p62, %p63
      %p65 = scmp.ne.s32.totalorder %s57, %s60
      %p66 = scmp.eq.s32.totalorder %s21, 0
      %p67 = por %p65, %p66
      %p68 = scmp.ne.s32.totalorder %s57, %s60
      %p69 = scmp.eq.s32.totalorder %s26, 1
      %p70 = por %p68, %p69
      %p71 = scmp.ne.s32.totalorder %s60, %s61
      %p72 = scmp.eq.s32.totalorder %s26, 0
      %p73 = por %p71, %p72
      %p74 = scmp.ne.s32.totalorder %s60, %s61
      %p75 = scmp.eq.s32.totalorder %s27, 1
      %p76 = por %p74, %p75
      %p78 = scmp.ne.s32.totalorder %s61, %s77
      %p79 = scmp.eq.s32.totalorder %s27, 0
      %p80 = por %p78, %p79
      %s82 = sadd.s32 %s81, 1
      %p85 = scmp.eq.s32.totalorder %s21, 1
      %p86 = scmp.ne.s32.totalorder %s81, %s83
      %p87 = scmp.eq.s32.totalorder %s21, 0
      %p88 = por %p86, %p87
      %p89 = scmp.ne.s32.totalorder %s81, %s83
      %p90 = scmp.eq.s32.totalorder %s26, 1
      %p91 = por %p89, %p90
      %p92 = scmp.ne.s32.totalorder %s83, %s84
      %p93 = scmp.eq.s32.totalorder %s26, 0
      %p94 = por %p92, %p93
      %p95 = scmp.ne.s32.totalorder %s83, %s84
      %p96 = scmp.eq.s32.totalorder %s27, 1
      %p97 = por %p95, %p96
      %p99 = scmp.ne.s32.totalorder %s84, %s98
      %p100 = scmp.eq.s32.totalorder %s27, 0
      %p101 = por %p99, %p100
      %s103 = sadd.s32 %s102, 1
      %p106 = scmp.eq.s32.totalorder %s21, 1
      %p107 = scmp.ne.s32.totalorder %s102, %s104
      %p108 = scmp.eq.s32.totalorder %s21, 0
      %p109 = por %p107, %p108
      %p110 = scmp.ne.s32.totalorder %s102, %s104
      %p111 = scmp.eq.s32.totalorder %s26, 1
      %p112 = por %p110, %p111
      %p113 = scmp.ne.s32.totalorder %s104, %s105
      %p114 = scmp.eq.s32.totalorder %s26, 0
      %p115 = por %p113, %p114
      %p116 = scmp.ne.s32.totalorder %s104, %s105
      %p117 = scmp.eq.s32.totalorder %s27, 1
      %p118 = por %p116, %p117
      %p120 = scmp.ne.s32.totalorder %s105, %s119
      %p121 = scmp.eq.s32.totalorder %s27, 0
      %p122 = por %p120, %p121
      %s124 = sadd.s32 %s123, 1
      %p127 = scmp.eq.s32.totalorder %s21, 1
      %p128 = scmp.ne.s32.totalorder %s123, %s125
      %p129 = scmp.eq.s32.totalorder %s21, 0
      %p130 = por %p128, %p129
      %p131 = scmp.ne.s32.totalorder %s123, %s125
      %p132 = scmp.eq.s32.totalorder %s26, 1
      %p133 = por %p131, %p132
      %p134 = scmp.ne.s32.totalorder %s125, %s126
      %p135 = scmp.eq.s32.totalorder %s26, 0
      %p136 = por %p134, %p135
      %p137 = scmp.ne.s32.totalorder %s125, %s126
      %p138 = scmp.eq.s32.totalorder %s27, 1
      %p139 = por %p137, %p138
      %p141 = scmp.ne.s32.totalorder %s126, %s140
      %p142 = scmp.eq.s32.totalorder %s27, 0
      %p143 = por %p141, %p142
      %s145 = sadd.s32 %s144, 1
      %p148 = scmp.eq.s32.totalorder %s21, 1
      %p149 = scmp.ne.s32.totalorder %s144, %s146
      %p150 = scmp.eq.s32.totalorder %s21, 0
      %p151 = por %p149, %p150
      %p152 = scmp.ne.s32.totalorder %s144, %s146
      %p153 = scmp.eq.s32.totalorder %s26, 1
      %p154 = por %p152, %p153
      %p155 = scmp.ne.s32.totalorder %s146, %s147
      %p156 = scmp.eq.s32.totalorder %s26, 0
      %p157 = por %p155, %p156
      %p158 = scmp.ne.s32.totalorder %s146, %s147
      %p159 = scmp.eq.s32.totalorder %s27, 1
      %p160 = por %p158, %p159
      %p162 = scmp.ne.s32.totalorder %s147, %s161
      %p163 = scmp.eq.s32.totalorder %s27, 0
      %p164 = por %p162, %p163
      %s165 = ssub.s32 %s21, %s28
      %p166 = scmp.eq.s32.totalorder %s165, 0
      %s168 = sadd.s32 %s167, 1
      %s169 = scalar_select %p166, %s167, %s168
      %p172 = pneg %p166
      %p173 = scmp.eq.s32.totalorder %s21, 1
      %p174 = por %p172, %p173
      %p175 = scmp.ne.s32.totalorder %s167, %s170
      %p176 = scmp.eq.s32.totalorder %s21, 0
      %p177 = por %p175, %p176
      %p178 = scmp.ne.s32.totalorder %s167, %s170
      %p179 = scmp.eq.s32.totalorder %s26, 1
      %p180 = por %p178, %p179
      %p181 = scmp.ne.s32.totalorder %s170, %s171
      %p182 = scmp.eq.s32.totalorder %s26, 0
      %p183 = por %p181, %p182
      %p184 = scmp.ne.s32.totalorder %s170, %s171
      %p185 = scmp.eq.s32.totalorder %s27, 1
      %p186 = por %p184, %p185
      %p188 = scmp.ne.s32.totalorder %s171, %s187
      %p189 = scmp.eq.s32.totalorder %s27, 0
      %p190 = por %p188, %p189
      %p191 = scmp.le.s32.totalorder 1, %s21
      %p192 = scmp.lt.s32.totalorder %s21, 3
      %p193 = pnand %p191, %p192
      %p194 = pneg %p193
      // Predicated region
      $region9: #{tpu_custom_call.1} parent=5 // pred_check
        _
      $region10: #{tpu_custom_call.1} parent=5 // pred_check_branch
        %196 = sbr.rel (%p193) target = $region12
      $region11: #{tpu_custom_call.1} parent=5 // pred_region
        %s197 = ssub.s32 %s21, 1
        // Predicated region
        $region13: #{tpu_custom_call.1} parent=11 // pred_check
          %p198 = pneg %p94
        $region14: #{tpu_custom_call.1} parent=11 // pred_check_branch
          %200 = sbr.rel (%p198) target = $region16
        $region15: #{tpu_custom_call.1} parent=11 // pred_region
          _
        $region16: #{tpu_custom_call.1} parent=11 // pred_fallthru
          _
        // Predicated region
        $region17: #{tpu_custom_call.1} parent=11 // pred_check
          %p201 = pneg %p115
        $region18: #{tpu_custom_call.1} parent=11 // pred_check_branch
          %203 = sbr.rel (%p201) target = $region20
        $region19: #{tpu_custom_call.1} parent=11 // pred_region
          _
        $region20: #{tpu_custom_call.1} parent=11 // pred_fallthru
          _
        // Predicated region
        $region21: #{tpu_custom_call.1} parent=11 // pred_check
          %p204 = pneg %p136
        $region22: #{tpu_custom_call.1} parent=11 // pred_check_branch
          %206 = sbr.rel (%p204) target = $region24
        $region23: #{tpu_custom_call.1} parent=11 // pred_region
          _
        $region24: #{tpu_custom_call.1} parent=11 // pred_fallthru
          _
        // Predicated region
        $region25: #{tpu_custom_call.1} parent=11 // pred_check
          %p207 = pneg %p157
        $region26: #{tpu_custom_call.1} parent=11 // pred_check_branch
          %209 = sbr.rel (%p207) target = $region28
        $region27: #{tpu_custom_call.1} parent=11 // pred_region
          _
        $region28: #{tpu_custom_call.1} parent=11 // pred_fallthru
          _
      $region12: #{tpu_custom_call.1} parent=5 // pred_fallthru
        _
      %p210 = scmp.lt.s32.totalorder %s21, 2
      // Predicated region
      $region29: #{tpu_custom_call.1} parent=5 // pred_check
        %p211 = pneg %p210
      $region30: #{tpu_custom_call.1} parent=5 // pred_check_branch
        %213 = sbr.rel (%p211) target = $region32
      $region31: #{tpu_custom_call.1} parent=5 // pred_region
        // Predicated region
        $region33: #{tpu_custom_call.1} parent=31 // pred_check
          %p214 = pneg %p41
        $region34: #{tpu_custom_call.1} parent=31 // pred_check_branch
          %216 = sbr.rel (%p214) target = $region36
        $region35: #{tpu_custom_call.1} parent=31 // pred_region
          %s217 = sand.u32 %s31, 1
          %s218 = scalar_lea.sflag [#allocation3], %s217
          %s219 = sand.u32 %s31, 1
          %s220 = smul.addr %s219, 8
          %s221 = scalar_lea.vmem [#allocation2], %s220
          %223 = vsyncadd %s218, 0
          %s224 = smul.addr %s21, 2
          %s225 = smul.addr %s224, 8
          %s226 = scalar_lea.hbm %s0, %s225
          %s228 = sshll.u32 %s226, 4
          %s229 = int_to_ptr.hbm [resolvable:$true] %s228
          %s230 = sshll.u32 %s221, 4
          %s231 = int_to_ptr.vmem [resolvable:$true] %s230
          %233 = dma.hbm_to_vmem [thread:$0]  %s229, 128, %s231, %s218
        $region36: #{tpu_custom_call.1} parent=31 // pred_fallthru
          _
        // Predicated region
        $region37: #{tpu_custom_call.1} parent=31 // pred_check
          %p234 = pneg %p67
        $region38: #{tpu_custom_call.1} parent=31 // pred_check_branch
          %236 = sbr.rel (%p234) target = $region40
        $region39: #{tpu_custom_call.1} parent=31 // pred_region
          %s237 = sand.u32 %s57, 1
          %s238 = scalar_lea.sflag [#allocation6], %s237
          %s239 = sand.u32 %s57, 1
          %s240 = smul.addr %s239, 8
          %s241 = scalar_lea.vmem [#allocation5], %s240
          %243 = vsyncadd %s238, 0
          %s244 = smul.addr %s21, 2
          %s245 = sadd.s32 1, %s244
          %s246 = smul.addr %s245, 8
          %s247 = scalar_lea.hbm %s1, %s246
          %s249 = sshll.u32 %s247, 4
          %s250 = int_to_ptr.hbm [resolvable:$true] %s249
          %s251 = sshll.u32 %s241, 4
          %s252 = int_to_ptr.vmem [resolvable:$true] %s251
          %254 = dma.hbm_to_vmem [thread:$0]  %s250, 128, %s252, %s238
        $region40: #{tpu_custom_call.1} parent=31 // pred_fallthru
          _
      $region32: #{tpu_custom_call.1} parent=5 // pred_fallthru
        _
      %p255 = scmp.le.s32.totalorder 1, %s21
      %p256 = scmp.lt.s32.totalorder %s21, 3
      %p257 = pnand %p255, %p256
      %p258 = pneg %p257
      // Predicated region
      $region41: #{tpu_custom_call.1} parent=5 // pred_check
        _
      $region42: #{tpu_custom_call.1} parent=5 // pred_check_branch
        %260 = sbr.rel (%p257) target = $region44
      $region43: #{tpu_custom_call.1} parent=5 // pred_region
        %s261 = ssub.s32 %s21, 1
        %s262 = sand.u32 %s34, 1
        %s263 = scalar_lea.sflag [#allocation3], %s262
        %s264 = sand.u32 %s34, 1
        %s265 = smul.addr %s264, 8
        %s266 = scalar_lea.vmem [#allocation2], %s265
        // Predicated region
        $region45: #{tpu_custom_call.1} parent=43 // pred_check
          %p267 = pneg %p47
        $region46: #{tpu_custom_call.1} parent=43 // pred_check_branch
          %269 = sbr.rel (%p267) target = $region48
        $region47: #{tpu_custom_call.1} parent=43 // pred_region
          %271 = dma.done %s263, 128
        $region48: #{tpu_custom_call.1} parent=43 // pred_fallthru
          _
        %s272 = sand.u32 %s60, 1
        %s273 = scalar_lea.sflag [#allocation6], %s272
        %s274 = sand.u32 %s60, 1
        %s275 = smul.addr %s274, 8
        %s276 = scalar_lea.vmem [#allocation5], %s275
        // Predicated region
        $region49: #{tpu_custom_call.1} parent=43 // pred_check
          %p277 = pneg %p73
        $region50: #{tpu_custom_call.1} parent=43 // pred_check_branch
          %279 = sbr.rel (%p277) target = $region52
        $region51: #{tpu_custom_call.1} parent=43 // pred_region
          %281 = dma.done %s273, 128
        $region52: #{tpu_custom_call.1} parent=43 // pred_fallthru
          _
        %s282 = sand.u32 %s34, 1
        %s283 = scalar_lea.sflag [#allocation3], %s282
        %s284 = sand.u32 %s34, 1
        %s285 = smul.addr %s284, 8
        %s286 = scalar_lea.vmem [#allocation2], %s285
        %p287 = pneg %p47
        %p288 = pneg %p44
        %s289 = sand.u32 %s60, 1
        %s290 = scalar_lea.sflag [#allocation6], %s289
        %s291 = sand.u32 %s60, 1
        %s292 = smul.addr %s291, 8
        %s293 = scalar_lea.vmem [#allocation5], %s292
        %p294 = pneg %p73
        %p295 = pneg %p70
        %p296 = pneg %p94
        %p297 = pneg %p91
        %p298 = pneg %p115
        %p299 = pneg %p112
        %p300 = pneg %p136
        %p301 = pneg %p133
        %p302 = pneg %p157
        %p303 = pneg %p154
        %p304 = pneg %p183
        %p305 = pneg %p180
        %s306 = sand.u32 %s170, 1
        %s307 = scalar_lea.sflag [#allocation4], %s306
        %s308 = sand.u32 %s170, 1
        %s309 = smul.addr %s308, 8
        %s310 = scalar_lea.vmem [#allocation7], %s309
        %v311 = vld [vmem:[%s2] sm:$0x1]
        %v312 = vld [vmem:[%s3] sm:$0x1]
        %v313 = vld [vmem:[%s4] sm:$0xff]
        %v314 = vld [vmem:[%s5] sm:$0xff]
        %316 = vset.pattern.permute.xlu0 0
        %317 = vperm.xlu0 %316, %v314
        %v318 = vpop.permute.xlu0 %317
        %v320 = vld [vmem:[%s276] sm:$0xff]
        %321 = vadd.xlane.f32.xlu0 %v320
        %v322 = vpop.xlane.xlu0 %321
        %v323 = vrcp.pop 128.0
        %v324 = vmul.f32 128.0, %v323
        %v325 = vsub.f32 1.0, %v324
        %v326 = vmul.f32 %v323, %v325
        %v327 = vadd.f32 %v323, %v326
        %vm328 = vweird.f32 %v323
        %v329 = vsel %vm328, %v323, %v327
        %v330 = vmul.f32 %v322, %v329
        %v331 = vsub.f32 %v320, %v330
        %v332 = vmul.f32 %v331, %v331
        %333 = vadd.xlane.f32.xlu0 %v332
        %v334 = vpop.xlane.xlu0 %333
        %v335 = vmul.f32 %v334, %v329
        %v336 = vadd.f32 %v335, 1e-05
        %v337 = vrsqrt.pop %v336
        %v338 = vmul.f32 %v337, %v336
        %v339 = vmul.f32 %v338, %v337
        %v340 = vmul.f32 0.5, %v339
        %v341 = vsub.f32 1.5, %v340
        %v342 = vmul.f32 %v337, %v341
        %vm343 = vweird.f32 %v336
        %vm344 = vweird.f32 %v337
        %vm345 = vmor %vm343, %vm344
        %v346 = vsel %vm345, %v337, %v342
        %v347 = vmul.f32 %v331, %v346
        %v349 = vperm.slane %v311, 0
        %v351 = vmul.f32 %v347, %v349
        %v353 = vperm.slane %v312, 0
        %v355 = vadd.f32 %v351, %v353
        %vm356 = vcmask 64512
        %v358 = vsel %vm356, %v313, 0
        %360 = vmatpush.msra.mxu0 0.0
        %361 = vmatpush.msra.mxu0 0.0
        %362 = vmatpush.msra.mxu0 0.0
        %363 = vmatpush.msra.mxu0 0.0
        %364 = vmatpush.msra.mxu0 0.0
        %365 = vmatpush.msra.mxu0 0.0
        %366 = vmatpush.msra.mxu0 0.0
        %367 = vmatpush.msra.mxu0 0.0
        %368 = vmatpush.msra.mxu0 0.0
        %369 = vmatpush.msra.mxu0 0.0
        %370 = vmatpush.msra.mxu0 0.0
        %371 = vmatpush.msra.mxu0 0.0
        %372 = vmatpush.msra.mxu0 0.0
        %373 = vmatpush.msra.mxu0 0.0
        %374 = vmatpush.msra.mxu0 0.0
        %375 = vmatpush.msra.mxu0 %v355
        %376 = vmatmul.f32.gmra.mxu0 %v358
        %v377 = vpop.f32.mrf.mxu0
        %v378 = vadd.f32 %v318, %v377
        %379 = vdwg.mxu0
        %v380 = vld [vmem:[%s266] sm:$0xff]
        %v381 = vmul.f32 %v380, %v378
        %382 = vst [vmem:[%s310] sm:$0xff] %v381
        %s383 = sand.u32 %s170, 1
        %s384 = scalar_lea.sflag [#allocation4], %s383
        %s385 = sand.u32 %s170, 1
        %s386 = smul.addr %s385, 8
        %s387 = scalar_lea.vmem [#allocation7], %s386
        // Predicated region
        $region53: #{tpu_custom_call.1} parent=43 // pred_check
          %p388 = pneg %p180
        $region54: #{tpu_custom_call.1} parent=43 // pred_check_branch
          %390 = sbr.rel (%p388) target = $region56
        $region55: #{tpu_custom_call.1} parent=43 // pred_region
          %392 = vsyncadd %s384, 0
          %s393 = smul.addr %s26, 8
          %s394 = scalar_lea.hbm %s6, %s393
          %s396 = sshll.u32 %s387, 4
          %s397 = int_to_ptr.vmem [resolvable:$true] %s396
          %s398 = sshll.u32 %s394, 4
          %s399 = int_to_ptr.hbm [resolvable:$true] %s398
          %401 = dma.vmem_to_hbm [thread:$0]  %s397, 128, %s399, %s384
        $region56: #{tpu_custom_call.1} parent=43 // pred_fallthru
          _
      $region44: #{tpu_custom_call.1} parent=5 // pred_fallthru
        _
      %p402 = scmp.le.s32.totalorder 2, %s21
      // Predicated region
      $region57: #{tpu_custom_call.1} parent=5 // pred_check
        %p403 = pneg %p402
      $region58: #{tpu_custom_call.1} parent=5 // pred_check_branch
        %405 = sbr.rel (%p403) target = $region60
      $region59: #{tpu_custom_call.1} parent=5 // pred_region
        %s406 = ssub.s32 %s21, 2
        // Predicated region
        $region61: #{tpu_custom_call.1} parent=59 // pred_check
          %p407 = pneg %p186
        $region62: #{tpu_custom_call.1} parent=59 // pred_check_branch
          %409 = sbr.rel (%p407) target = $region64
        $region63: #{tpu_custom_call.1} parent=59 // pred_region
          %s410 = sand.u32 %s171, 1
          %s411 = scalar_lea.sflag [#allocation4], %s410
          %s412 = sand.u32 %s171, 1
          %s413 = smul.addr %s412, 8
          %s414 = scalar_lea.vmem [#allocation7], %s413
          %416 = dma.done %s411, 128
        $region64: #{tpu_custom_call.1} parent=59 // pred_fallthru
          _
      $region60: #{tpu_custom_call.1} parent=5 // pred_fallthru
        _
    $region6: #{tpu_custom_call.1} parent=1 // loop_footer
      %s25 = sadd.s32 1, %s21
    $region7: #{tpu_custom_call.1} parent=1 // loop_footer_branch
      %20 = sbr.rel target = $region3
    $region8: #{tpu_custom_call.1} parent=1 // loop_exit
      _
    %417 = vsyncpa [#allocation3], 1
    %s418 = scalar_lea.sflag [#allocation3], 1
    %419 = vsyncpa %s418, 1
    %420 = vsyncpa [#allocation6], 1
    %s421 = scalar_lea.sflag [#allocation6], 1
    %422 = vsyncpa %s421, 1
    %423 = vsyncpa [#allocation4], 1
    %s424 = scalar_lea.sflag [#allocation4], 1
    %425 = vsyncpa %s424, 1

</llo_original>
